<compile_context>
chip_gen: v7x
topology: tpu7x:2x2x1
jax: 0.10.0
libtpu: 0.0.40
codegen_flags: <defaults>
</compile_context>

<pallas_src>
import jax
import jax.numpy as jnp
import numpy as np
from jax.experimental import pallas as pl
from jax.experimental.pallas import tpu as pltpu

_TARGET_STEP_BYTES = 2 * 1024 * 1024  # ~2 MiB of in+out traffic per grid step


def _pick_batch_tile(n: int, per_image_bytes: int) -> int:
    """Largest batch tile that divides n, keeps the block sublane-friendly
    (tb % 8 == 0 or tb == n, so BlockSpec tiling constraints are met) and fits
    the per-step traffic budget; prefers a >=2-step even grid so v7x megacore
    gets at least one step per TensorCore."""
    valid = [tb for tb in range(1, n + 1)
             if n % tb == 0 and (tb % 8 == 0 or tb == n)]
    fitting = [tb for tb in valid if tb * per_image_bytes <= _TARGET_STEP_BYTES]
    if not fitting:
        return min(valid)  # may exceed target; wrapper budgets VMEM for it
    tb = max(fitting)
    if n // tb < 2:
        even = [t for t in fitting if (n // t) >= 2 and (n // t) % 2 == 0]
        if even:
            tb = max(even)
    return tb


def _make_pad_kernel(pad: int, c: int, l: int, tb: int):
    """Kernel body on the flattened layout: zero lanes [0, pad*L) and
    [(pad+c)*L, end), copy the real channels into the middle."""
    lo = pad * l   # lane offset where the real channels start
    mid = c * l    # width of the copied slab

    def pad_kernel(x_ref, o_ref):
        # x_ref: (TB, C*L) in VMEM; o_ref: (TB, (C + 2*pad)*L).
        # All slice bounds are Python ints -> static stores, each output vreg
        # written exactly once, no zero-tile + dynamic_update_slice.
        zeros = jnp.zeros((tb, lo), dtype=o_ref.dtype)
        o_ref[:, :lo] = zeros
        o_ref[:, lo + mid:] = zeros
        o_ref[:, lo:lo + mid] = x_ref[...].astype(o_ref.dtype)

    return pad_kernel


def lambda_layer(x: jax.Array, planes: int) -> jax.Array:
    """Option-A ResNet shortcut: x[:, :, ::2, ::2] zero-padded on the channel dim."""
    n, c, h, w = x.shape
    pad = planes // 4
    ho, wo = -(-h // 2), -(-w // 2)      # ceil division: matches ::2 for odd H/W
    l = ho * wo
    c_out = c + 2 * pad

    # Stride-2 spatial downsample + flatten (C, Ho, Wo) into the lane axis.
    # With allow_input_fusion=[True] below, XLA may fuse this producer into
    # the pallas input fetch so only the kept elements cross HBM once.
    xs_flat = x[:, :, ::2, ::2].reshape(n, c * l)

    if pad == 0:
        # Nothing to pad; the shortcut is just the downsample.
        return xs_flat.reshape(n, c, ho, wo)

    itemsize = jnp.dtype(x.dtype).itemsize
    per_image_bytes = (c * l + c_out * l) * itemsize
    tb = _pick_batch_tile(n, per_image_bytes)
    grid = (n // tb,)

    params = dict(
        dimension_semantics=("parallel",),
        allow_input_fusion=[True],
    )
    dbuf_bytes = 2 * tb * per_image_bytes      # double-buffered in+out footprint
    if dbuf_bytes > 12 * 1024 * 1024:          # beyond v5e's default scoped VMEM
        params["vmem_limit_bytes"] = int(dbuf_bytes + (4 << 20))

    out_flat = pl.pallas_call(
        _make_pad_kernel(pad, c, l, tb),
        out_shape=jax.ShapeDtypeStruct((n, c_out * l), x.dtype),
        grid=grid,
        in_specs=[pl.BlockSpec((tb, c * l), lambda i: (i, 0))],
        out_specs=pl.BlockSpec((tb, c_out * l), lambda i: (i, 0)),
        compiler_params=pltpu.CompilerParams(**params),
    )(xs_flat)

    return out_flat.reshape(n, c_out, ho, wo)


def _reference(x: jnp.ndarray, planes: int) -> jnp.ndarray:
    """Pure-JAX reference matching the PyTorch lambda semantics."""
    pad = planes // 4
    xs = x[:, :, ::2, ::2]
    return jnp.pad(xs, ((0, 0), (pad, pad), (0, 0), (0, 0)), mode="constant")


if __name__ == "__main__":
    # Primary config, consistent with a ResNet basic-block shortcut:
    # in_planes=4 -> planes=8, batch=2, spatial=16.
    N, C, H, W = 2, 4, 16, 16
    planes = 8
    x = jax.random.normal(jax.random.PRNGKey(0), (N, C, H, W), dtype=jnp.float32)

    out = jax.block_until_ready(lambda_layer(x, planes))
    ref = _reference(x, planes)
    ho, wo = -(-H // 2), -(-W // 2)
    assert out.shape == (N, C + 2 * (planes // 4), ho, wo), out.shape
    np.testing.assert_allclose(np.asarray(out), np.asarray(ref), atol=0.0, rtol=0.0)

    # Odd spatial dims (ceil-division path).
    x2 = jax.random.normal(jax.random.PRNGKey(1), (2, 4, 15, 15), dtype=jnp.float32)
    out2 = jax.block_until_ready(lambda_layer(x2, 8))
    np.testing.assert_allclose(np.asarray(out2), np.asarray(_reference(x2, 8)),
                               atol=0.0, rtol=0.0)

    # bf16, larger pad, batch tile that is a multiple of 8, Ho*Wo = 64 < 128
    # (exercises the lane-dense flattened layout).
    x3 = jax.random.normal(jax.random.PRNGKey(2), (8, 16, 8, 8), dtype=jnp.bfloat16)
    out3 = jax.block_until_ready(lambda_layer(x3, 32))
    np.testing.assert_allclose(np.asarray(out3).astype(np.float32),
                               np.asarray(_reference(x3, 32)).astype(np.float32),
                               atol=0.0, rtol=0.0)

    print("KERNEL_OK")
</pallas_src>

<mosaic_0001>
module attributes {stable_mosaic.version = 11 : i64} {
  func.func @pad_kernel(%arg0: i32, %arg1: memref<2x256xf32, #tpu.memory_space<vmem>>, %arg2: memref<2x512xf32, #tpu.memory_space<vmem>>) attributes {dimension_semantics = [#tpu.dimension_semantics<parallel>], iteration_bounds = array<i64: 1>, scalar_prefetch = 0 : i64, scratch_operands = 0 : i64, tpu.core_type = #tpu.core_type<tc>, window_params = [{transform_indices = @transform_0, window_bounds = array<i64: 2, 256>}, {transform_indices = @transform_1, window_bounds = array<i64: 2, 512>}]} {
    %cst = arith.constant 0.000000e+00 : f32
    %0 = vector.broadcast %cst : f32 to vector<2x128xf32>
    %c0 = arith.constant 0 : index
    %c0_0 = arith.constant 0 : index
    %1 = vector.load %arg2[%c0, %c0_0] : memref<2x512xf32, #tpu.memory_space<vmem>>, vector<2x128xf32>
    tpu.vector_store %arg2[%c0, %c0_0], %0 {strides = array<i32>} : memref<2x512xf32, #tpu.memory_space<vmem>>, vector<2x128xf32>,
    %c0_1 = arith.constant 0 : index
    %c384 = arith.constant 384 : index
    %2 = vector.load %arg2[%c0_1, %c384] : memref<2x512xf32, #tpu.memory_space<vmem>>, vector<2x128xf32>
    tpu.vector_store %arg2[%c0_1, %c384], %0 {strides = array<i32>} : memref<2x512xf32, #tpu.memory_space<vmem>>, vector<2x128xf32>,
    %c0_2 = arith.constant 0 : index
    %c0_3 = arith.constant 0 : index
    %3 = vector.load %arg1[%c0_2, %c0_3] : memref<2x256xf32, #tpu.memory_space<vmem>>, vector<2x256xf32>
    %c0_4 = arith.constant 0 : index
    %c128 = arith.constant 128 : index
    %4 = vector.load %arg2[%c0_4, %c128] : memref<2x512xf32, #tpu.memory_space<vmem>>, vector<2x256xf32>
    tpu.vector_store %arg2[%c0_4, %c128], %3 {strides = array<i32>} : memref<2x512xf32, #tpu.memory_space<vmem>>, vector<2x256xf32>,
    return
  }
  func.func @transform_0(%arg0: i32) -> (i32, i32) {
    %c0_i32 = arith.constant 0 : i32
    %c0_i32_0 = arith.constant 0 : i32
    return %arg0, %c0_i32 : i32, i32
  }
  func.func @transform_1(%arg0: i32) -> (i32, i32) {
    %c0_i32 = arith.constant 0 : i32
    %c0_i32_0 = arith.constant 0 : i32
    return %arg0, %c0_i32 : i32, i32
  }
}

</mosaic_0001>

<llo_original>
// kernel: tpu_custom_call.1
$region0: #{tpu_custom_call.1}
  #allocation0 [shape = 'u32[]', space=smem, size = 0x4, offset = 0x4, fixed_abs, tag = 'smem constant byte address 0x4 - core index']
  #allocation1 [shape = 'u32[144,128]{1,0:T(1,128)}', space=vmem, size = 0x12000, scoped, tag = 'internal scratch']
  %s0 = inlined_call_operand.hbm [shape: f32[2,256], index: 0, kind: input, shape index: {}]
  %s1 = inlined_call_operand.hbm [shape: f32[2,512], index: 1, kind: output, shape index: {}]
  %s2 = sld [smem:[#allocation0]]
  $region18: #{tpu_custom_call.1} parent=0
    _
  %s4 = ssub.s32 1, %s2
  %s5 = scalar_select 0, %s4, %s2
  $region1: #{tpu_custom_call.1} parent=0
    #allocation2 [shape = 'u8[2048]{0}', space=vmem, size = 0x800, scoped, tag = 'input window, operand 0, single buffered']
    #allocation3 [shape = 's32[1]{0}', space=sflag, size = 0x4, scoped, tag = 'scoped memory for tpu_custom_call.1']
    #allocation4 [shape = 's32[1]{0}', space=sflag, size = 0x4, scoped, tag = 'scoped memory for tpu_custom_call.1']
    #allocation5 [shape = 'u8[4096]{0}', space=vmem, size = 0x1000, scoped, tag = 'output window, operand 0, single buffered']
    %6 = vsyncpa [#allocation3], 0
    %7 = vsyncpa [#allocation4], 0
    // Predicated region
    $region2: #{tpu_custom_call.1} parent=1 // pred_check
      _
    $region3: #{tpu_custom_call.1} parent=1 // pred_check_branch
      %9 = sbr.rel (0) target = $region5
    $region4: #{tpu_custom_call.1} parent=1 // pred_region
      %s11 = ssub.s32 64, 64
      %12 = vsyncadd [#allocation3], %s11
      %s14 = sshll.u32 [#allocation2], 4
      %s15 = int_to_ptr.vmem [resolvable:$true] %s14
      %17 = dma.hbm_to_vmem [thread:$0]  %s0, 64, %s15, [#allocation3]
    $region5: #{tpu_custom_call.1} parent=1 // pred_fallthru
      _
    // Predicated region
    $region6: #{tpu_custom_call.1} parent=1 // pred_check
      _
    $region7: #{tpu_custom_call.1} parent=1 // pred_check_branch
      %19 = sbr.rel (0) target = $region9
    $region8: #{tpu_custom_call.1} parent=1 // pred_region
      %20 = dma.done [#allocation3], 64
    $region9: #{tpu_custom_call.1} parent=1 // pred_fallthru
      _
    %21 = vst [vmem:[#allocation5] sm:$0x3] 0.0
    %22 = vst [vmem:[#allocation5 + $0x6] sm:$0x3] 0.0
    %v23 = vld [vmem:[#allocation2] sm:$0xf]
    %24 = vst [vmem:[#allocation5 + $0x2] sm:$0xf] %v23
    // Predicated region
    $region10: #{tpu_custom_call.1} parent=1 // pred_check
      _
    $region11: #{tpu_custom_call.1} parent=1 // pred_check_branch
      %26 = sbr.rel (0) target = $region13
    $region12: #{tpu_custom_call.1} parent=1 // pred_region
      %s28 = ssub.s32 128, 128
      %29 = vsyncadd [#allocation4], %s28
      %s31 = sshll.u32 [#allocation5], 4
      %s32 = int_to_ptr.vmem [resolvable:$true] %s31
      %34 = dma.vmem_to_hbm [thread:$0]  %s32, 128, %s1, [#allocation4]
    $region13: #{tpu_custom_call.1} parent=1 // pred_fallthru
      _
    // Predicated region
    $region14: #{tpu_custom_call.1} parent=1 // pred_check
      _
    $region15: #{tpu_custom_call.1} parent=1 // pred_check_branch
      %36 = sbr.rel (0) target = $region17
    $region16: #{tpu_custom_call.1} parent=1 // pred_region
      %37 = dma.done [#allocation4], 128
    $region17: #{tpu_custom_call.1} parent=1 // pred_fallthru
      _
    %38 = vsyncpa [#allocation3], 1
    %39 = vsyncpa [#allocation4], 1

</llo_original>
